<compile_context>
chip_gen: v5e
topology: v5e:2x2
jax: 0.10.0
libtpu: 0.0.40
codegen_flags: <defaults>
</compile_context>

<pallas_src>
import math

import jax
import jax.numpy as jnp
from jax.experimental import pallas as pl
from jax.experimental.pallas import tpu as pltpu


def _round_up(x, m):
    return ((x + m - 1) // m) * m


def _ocr_ptr_kernel(q_ref, k_ref, mask_ref, wq_ref, bq_ref, wk_ref, bk_ref, out_ref):
    Bb, Tq, Hp = q_ref.shape
    _, Tk, _ = k_ref.shape
    Dkp = wq_ref.shape[1]

    # Flatten the batch block into the matmul M dimension.
    # Tq/Tk are multiples of 8 and Hp of 128, so this reshape is a free tile stack.
    q2 = q_ref[...].reshape(Bb * Tq, Hp)            # (Bb*Tq, Hp)
    k2 = k_ref[...].reshape(Bb * Tk, Hp)            # (Bb*Tk, Hp)

    # Linear projections: x @ W  (weights pre-transposed; Wq/bq pre-scaled by 1/sqrt(Dk)).
    q_proj = jnp.dot(q2, wq_ref[...], preferred_element_type=jnp.float32) + bq_ref[...]
    k_proj = jnp.dot(k2, wk_ref[...], preferred_element_type=jnp.float32) + bk_ref[...]

    q3 = q_proj.reshape(Bb, Tq, Dkp)
    k3 = k_proj.reshape(Bb, Tk, Dkp)

    # Batched Q @ K^T, contracting the last dims of both operands (no transpose).
    scores = jnp.einsum("bqd,bkd->bqk", q3, k3,
                        preferred_element_type=jnp.float32)   # (Bb, Tq, Tk)

    # Extended attention mask, broadcast over the query axis.
    ext_mask = (1.0 - mask_ref[...]) * -10000.0                # (Bb, 1, Tk)
    out_ref[...] = (scores + ext_mask).astype(out_ref.dtype)


def _pick_block_b(B, Tqp, Tkp, Hp, Dkp, budget_bytes=24 * 1024 * 1024):
    """Fold batch elements into one block so the projection M dim is >= 256,
    bounded by a double-buffered VMEM budget."""
    bb = min(B, max(1, -(-256 // Tqp)))

    def need(b):
        per_step = 4 * b * (Tqp * Hp + Tkp * Hp + Tkp + Tqp * Tkp)
        weights = 4 * (2 * Hp * Dkp + 2 * Dkp)
        return 2 * per_step + 2 * weights           # double-buffered blocks + weights

    while bb > 1 and need(bb) > budget_bytes:
        bb -= 1
    return bb, need(bb)


def ocr_ptr_net(query_inputs, key_inputs, attention_mask, wq, bq, wk, bk):
    """Pallas-backed OcrPtrNet forward.

    query_inputs: (B, Tq, H) or (B, H) float32
    key_inputs:   (B, Tk, H) float32
    attention_mask: (B, Tk) float32 (0/1)
    wq, wk: (Dk, H)  (PyTorch Linear layout);  bq, bk: (Dk,)
    Returns (B, Tq, Tk) scores, or (B, Tk) if query_inputs was 2-D.
    """
    squeeze_result = query_inputs.ndim == 2
    if squeeze_result:
        query_inputs = query_inputs[:, None, :]

    B, Tq, H = query_inputs.shape
    _, Tk, _ = key_inputs.shape
    Dk = wq.shape[0]

    f32 = jnp.float32
    query_inputs = query_inputs.astype(f32)
    key_inputs = key_inputs.astype(f32)
    attention_mask = attention_mask.astype(f32)

    # Pad to TPU-friendly sizes: lane (last) dims to 128, sublane dims to 8.
    Hp = _round_up(H, 128)
    Dkp = _round_up(Dk, 128)
    Tkp = _round_up(Tk, 128)
    Tqp = _round_up(Tq, 8)

    block_b, vmem_need = _pick_block_b(B, Tqp, Tkp, Hp, Dkp)
    Bp = _round_up(B, block_b)
    grid_b = Bp // block_b

    # Fold 1/sqrt(Dk) into the query projection at trace time, pre-transpose the
    # weights to (H, Dk), and zero-pad (padded Q/K features are exactly zero, so the
    # padded lanes contribute nothing; padded Tk columns are sliced off below).
    scale = 1.0 / math.sqrt(Dk)
    wq_t = jnp.pad((wq.astype(f32) * scale).T, ((0, Hp - H), (0, Dkp - Dk)))
    bq_p = jnp.pad(bq.astype(f32) * scale, (0, Dkp - Dk)).reshape(1, Dkp)
    wk_t = jnp.pad(wk.astype(f32).T, ((0, Hp - H), (0, Dkp - Dk)))
    bk_p = jnp.pad(bk.astype(f32), (0, Dkp - Dk)).reshape(1, Dkp)

    q_p = jnp.pad(query_inputs, ((0, Bp - B), (0, Tqp - Tq), (0, Hp - H)))
    k_p = jnp.pad(key_inputs, ((0, Bp - B), (0, Tkp - Tk), (0, Hp - H)))
    mask_p = jnp.pad(attention_mask, ((0, Bp - B), (0, Tkp - Tk)))[:, None, :]  # (Bp,1,Tkp)

    flops = 2 * B * (Tq + Tk) * H * Dk + 2 * B * Tq * Tk * Dk
    bytes_accessed = 4 * (Bp * Tqp * Hp + Bp * Tkp * Hp + Bp * Tkp
                          + 2 * Hp * Dkp + 2 * Dkp + Bp * Tqp * Tkp)
    vmem_limit = int(min(32 * 1024 * 1024,
                         max(16 * 1024 * 1024, vmem_need + (4 << 20))))

    out = pl.pallas_call(
        _ocr_ptr_kernel,
        out_shape=jax.ShapeDtypeStruct((Bp, Tqp, Tkp), f32),
        grid_spec=pltpu.PrefetchScalarGridSpec(
            num_scalar_prefetch=0,
            grid=(grid_b,),
            in_specs=[
                pl.BlockSpec((block_b, Tqp, Hp), lambda b: (b, 0, 0)),   # query block
                pl.BlockSpec((block_b, Tkp, Hp), lambda b: (b, 0, 0)),   # key block
                pl.BlockSpec((block_b, 1, Tkp), lambda b: (b, 0, 0)),    # mask block
                pl.BlockSpec((Hp, Dkp), lambda b: (0, 0)),               # Wq^T (scaled)
                pl.BlockSpec((1, Dkp), lambda b: (0, 0)),                # bq (scaled)
                pl.BlockSpec((Hp, Dkp), lambda b: (0, 0)),               # Wk^T
                pl.BlockSpec((1, Dkp), lambda b: (0, 0)),                # bk
            ],
            out_specs=pl.BlockSpec((block_b, Tqp, Tkp), lambda b: (b, 0, 0)),
        ),
        compiler_params=pltpu.CompilerParams(
            dimension_semantics=("parallel",),
            vmem_limit_bytes=vmem_limit,
        ),
        cost_estimate=pl.CostEstimate(flops=flops, transcendentals=0,
                                      bytes_accessed=bytes_accessed),
    )(q_p, k_p, mask_p, wq_t, bq_p, wk_t, bk_p)

    out = out[:B, :Tq, :Tk]
    if squeeze_result:
        out = out[:, 0, :]
    return out


def _reference(query_inputs, key_inputs, attention_mask, wq, bq, wk, bk):
    """Pure-JAX reference mirroring the PyTorch forward."""
    squeeze_result = query_inputs.ndim == 2
    if squeeze_result:
        query_inputs = query_inputs[:, None, :]
    ext_mask = ((1.0 - attention_mask) * -10000.0)[:, None, :]
    q = query_inputs @ wq.T + bq
    k = key_inputs @ wk.T + bk
    scores = jnp.einsum("bqd,bkd->bqk", q, k) / math.sqrt(wq.shape[0])
    scores = scores + ext_mask
    if squeeze_result:
        scores = scores[:, 0, :]
    return scores


if __name__ == "__main__":
    key = jax.random.PRNGKey(0)
    B, Tq, Tk, H = 2, 8, 16, 32
    Dk = H  # query_key_size defaults to hidden_size

    k1, k2, k3, k4, k5, k6, k7 = jax.random.split(key, 7)
    query_inputs = jax.random.normal(k1, (B, Tq, H), dtype=jnp.float32)
    key_inputs = jax.random.normal(k2, (B, Tk, H), dtype=jnp.float32)
    attention_mask = (jax.random.uniform(k3, (B, Tk)) > 0.3).astype(jnp.float32)

    # Deterministic Linear params (PyTorch layout: weight (out, in), bias (out,))
    bound = 1.0 / math.sqrt(H)
    wq = jax.random.uniform(k4, (Dk, H), minval=-bound, maxval=bound, dtype=jnp.float32)
    bq = jax.random.uniform(k5, (Dk,), minval=-bound, maxval=bound, dtype=jnp.float32)
    wk = jax.random.uniform(k6, (Dk, H), minval=-bound, maxval=bound, dtype=jnp.float32)
    bk = jax.random.uniform(k7, (Dk,), minval=-bound, maxval=bound, dtype=jnp.float32)

    # 3-D query path
    out = ocr_ptr_net(query_inputs, key_inputs, attention_mask, wq, bq, wk, bk)
    out = jax.block_until_ready(out)
    ref = _reference(query_inputs, key_inputs, attention_mask, wq, bq, wk, bk)
    assert out.shape == (B, Tq, Tk)
    assert jnp.allclose(out, ref, atol=1e-4, rtol=1e-4)

    # 2-D query path (squeeze_result branch of the PyTorch module)
    q2d = query_inputs[:, 0, :]
    out2 = ocr_ptr_net(q2d, key_inputs, attention_mask, wq, bq, wk, bk)
    out2 = jax.block_until_ready(out2)
    ref2 = _reference(q2d, key_inputs, attention_mask, wq, bq, wk, bk)
    assert out2.shape == (B, Tk)
    assert jnp.allclose(out2, ref2, atol=1e-4, rtol=1e-4)

    print("KERNEL_OK")
</pallas_src>

<mosaic_0001>
module attributes {stable_mosaic.version = 11 : i64} {
  func.func @_ocr_ptr_kernel(%arg0: i32, %arg1: memref<2x8x128xf32, #tpu.memory_space<vmem>>, %arg2: memref<2x128x128xf32, #tpu.memory_space<vmem>>, %arg3: memref<2x1x128xf32, #tpu.memory_space<vmem>>, %arg4: memref<128x128xf32, #tpu.memory_space<vmem>>, %arg5: memref<1x128xf32, #tpu.memory_space<vmem>>, %arg6: memref<128x128xf32, #tpu.memory_space<vmem>>, %arg7: memref<1x128xf32, #tpu.memory_space<vmem>>, %arg8: memref<2x8x128xf32, #tpu.memory_space<vmem>>) attributes {dimension_semantics = [#tpu.dimension_semantics<parallel>], iteration_bounds = array<i64: 1>, scalar_prefetch = 0 : i64, scratch_operands = 0 : i64, tpu.core_type = #tpu.core_type<tc>, window_params = [{transform_indices = @transform_0, window_bounds = array<i64: 2, 8, 128>}, {transform_indices = @transform_1, window_bounds = array<i64: 2, 128, 128>}, {transform_indices = @transform_2, window_bounds = array<i64: 2, 1, 128>}, {pipeline_mode = #tpu.pipeline_mode<synchronous>, transform_indices = @transform_3, window_bounds = array<i64: 128, 128>}, {pipeline_mode = #tpu.pipeline_mode<synchronous>, transform_indices = @transform_4, window_bounds = array<i64: 1, 128>}, {pipeline_mode = #tpu.pipeline_mode<synchronous>, transform_indices = @transform_5, window_bounds = array<i64: 128, 128>}, {pipeline_mode = #tpu.pipeline_mode<synchronous>, transform_indices = @transform_6, window_bounds = array<i64: 1, 128>}, {transform_indices = @transform_7, window_bounds = array<i64: 2, 8, 128>}]} {
    %c0 = arith.constant 0 : index
    %c0_0 = arith.constant 0 : index
    %c0_1 = arith.constant 0 : index
    %0 = vector.load %arg1[%c0, %c0_0, %c0_1] : memref<2x8x128xf32, #tpu.memory_space<vmem>>, vector<2x8x128xf32>
    %1 = vector.shape_cast %0 : vector<2x8x128xf32> to vector<16x128xf32>
    %c0_2 = arith.constant 0 : index
    %c0_3 = arith.constant 0 : index
    %c0_4 = arith.constant 0 : index
    %2 = vector.load %arg2[%c0_2, %c0_3, %c0_4] : memref<2x128x128xf32, #tpu.memory_space<vmem>>, vector<2x128x128xf32>
    %3 = vector.shape_cast %2 : vector<2x128x128xf32> to vector<256x128xf32>
    %c0_5 = arith.constant 0 : index
    %c0_6 = arith.constant 0 : index
    %4 = vector.load %arg4[%c0_5, %c0_6] : memref<128x128xf32, #tpu.memory_space<vmem>>, vector<128x128xf32>
    %cst = arith.constant dense<0.000000e+00> : vector<16x128xf32>
    %5 = tpu.matmul %1, %4, %cst {dimension_numbers = #tpu.dot_dimension_numbers<[1], [0], [0], [1], [0, 0, 1, 1], [], []>} : vector<16x128xf32>, vector<128x128xf32>, vector<16x128xf32> -> vector<16x128xf32>
    %c0_7 = arith.constant 0 : index
    %c0_8 = arith.constant 0 : index
    %6 = vector.load %arg5[%c0_7, %c0_8] : memref<1x128xf32, #tpu.memory_space<vmem>>, vector<1x128xf32>
    %7 = vector.broadcast %6 : vector<1x128xf32> to vector<16x128xf32>
    %8 = arith.addf %5, %7 : vector<16x128xf32>
    %c0_9 = arith.constant 0 : index
    %c0_10 = arith.constant 0 : index
    %9 = vector.load %arg6[%c0_9, %c0_10] : memref<128x128xf32, #tpu.memory_space<vmem>>, vector<128x128xf32>
    %cst_11 = arith.constant dense<0.000000e+00> : vector<256x128xf32>
    %10 = tpu.matmul %3, %9, %cst_11 {dimension_numbers = #tpu.dot_dimension_numbers<[1], [0], [0], [1], [0, 0, 1, 1], [], []>} : vector<256x128xf32>, vector<128x128xf32>, vector<256x128xf32> -> vector<256x128xf32>
    %c0_12 = arith.constant 0 : index
    %c0_13 = arith.constant 0 : index
    %11 = vector.load %arg7[%c0_12, %c0_13] : memref<1x128xf32, #tpu.memory_space<vmem>>, vector<1x128xf32>
    %12 = vector.broadcast %11 : vector<1x128xf32> to vector<256x128xf32>
    %13 = arith.addf %10, %12 : vector<256x128xf32>
    %14 = vector.shape_cast %8 : vector<16x128xf32> to vector<2x8x128xf32>
    %15 = vector.shape_cast %13 : vector<256x128xf32> to vector<2x128x128xf32>
    "tpu.trace_start"() <{level = 10 : i32, message = "bqd,bkd->bqk"}> : () -> ()
    %cst_14 = arith.constant dense<0.000000e+00> : vector<2x8x128xf32>
    %16 = tpu.matmul %14, %15, %cst_14 {dimension_numbers = #tpu.dot_dimension_numbers<[2], [2], [1], [1], [0, 0, 0, 1, 1, 1], [0], [0]>} : vector<2x8x128xf32>, vector<2x128x128xf32>, vector<2x8x128xf32> -> vector<2x8x128xf32>
    "tpu.trace_stop"() : () -> ()
    %c0_15 = arith.constant 0 : index
    %c0_16 = arith.constant 0 : index
    %c0_17 = arith.constant 0 : index
    %17 = vector.load %arg3[%c0_15, %c0_16, %c0_17] : memref<2x1x128xf32, #tpu.memory_space<vmem>>, vector<2x1x128xf32>
    %cst_18 = arith.constant 1.000000e+00 : f32
    %18 = vector.broadcast %cst_18 : f32 to vector<2x1x128xf32>
    %19 = arith.subf %18, %17 : vector<2x1x128xf32>
    %cst_19 = arith.constant -1.000000e+04 : f32
    %20 = vector.broadcast %cst_19 : f32 to vector<2x1x128xf32>
    %21 = arith.mulf %19, %20 : vector<2x1x128xf32>
    %22 = vector.broadcast %21 : vector<2x1x128xf32> to vector<2x8x128xf32>
    %23 = arith.addf %16, %22 : vector<2x8x128xf32>
    %c0_20 = arith.constant 0 : index
    %c0_21 = arith.constant 0 : index
    %c0_22 = arith.constant 0 : index
    %24 = vector.load %arg8[%c0_20, %c0_21, %c0_22] : memref<2x8x128xf32, #tpu.memory_space<vmem>>, vector<2x8x128xf32>
    tpu.vector_store %arg8[%c0_20, %c0_21, %c0_22], %23 {strides = array<i32>} : memref<2x8x128xf32, #tpu.memory_space<vmem>>, vector<2x8x128xf32>,
    return
  }
  func.func @transform_0(%arg0: i32) -> (i32, i32, i32) {
    %c0_i32 = arith.constant 0 : i32
    %c0_i32_0 = arith.constant 0 : i32
    %c0_i32_1 = arith.constant 0 : i32
    return %arg0, %c0_i32, %c0_i32_0 : i32, i32, i32
  }
  func.func @transform_1(%arg0: i32) -> (i32, i32, i32) {
    %c0_i32 = arith.constant 0 : i32
    %c0_i32_0 = arith.constant 0 : i32
    %c0_i32_1 = arith.constant 0 : i32
    return %arg0, %c0_i32, %c0_i32_0 : i32, i32, i32
  }
  func.func @transform_2(%arg0: i32) -> (i32, i32, i32) {
    %c0_i32 = arith.constant 0 : i32
    %c0_i32_0 = arith.constant 0 : i32
    %c0_i32_1 = arith.constant 0 : i32
    return %arg0, %c0_i32, %c0_i32_0 : i32, i32, i32
  }
  func.func @transform_3(%arg0: i32) -> (i32, i32) {
    %c0_i32 = arith.constant 0 : i32
    %c0_i32_0 = arith.constant 0 : i32
    %c0_i32_1 = arith.constant 0 : i32
    return %c0_i32, %c0_i32_0 : i32, i32
  }
  func.func @transform_4(%arg0: i32) -> (i32, i32) {
    %c0_i32 = arith.constant 0 : i32
    %c0_i32_0 = arith.constant 0 : i32
    %c0_i32_1 = arith.constant 0 : i32
    return %c0_i32, %c0_i32_0 : i32, i32
  }
  func.func @transform_5(%arg0: i32) -> (i32, i32) {
    %c0_i32 = arith.constant 0 : i32
    %c0_i32_0 = arith.constant 0 : i32
    %c0_i32_1 = arith.constant 0 : i32
    return %c0_i32, %c0_i32_0 : i32, i32
  }
  func.func @transform_6(%arg0: i32) -> (i32, i32) {
    %c0_i32 = arith.constant 0 : i32
    %c0_i32_0 = arith.constant 0 : i32
    %c0_i32_1 = arith.constant 0 : i32
    return %c0_i32, %c0_i32_0 : i32, i32
  }
  func.func @transform_7(%arg0: i32) -> (i32, i32, i32) {
    %c0_i32 = arith.constant 0 : i32
    %c0_i32_0 = arith.constant 0 : i32
    %c0_i32_1 = arith.constant 0 : i32
    return %arg0, %c0_i32, %c0_i32_0 : i32, i32, i32
  }
}

</mosaic_0001>

<llo_original>
// kernel: tpu_custom_call.1
$region0: #{tpu_custom_call.1}
  #allocation0 [shape = 'u32[]', space=smem, size = 0x4, offset = 0x4, fixed_abs, tag = 'smem constant byte address 0x4 - core index']
  #allocation1 [shape = 'u32[72,128]{1,0:T(1,128)}', space=vmem, size = 0x9000, scoped, tag = 'internal scratch']
  %s0 = inlined_call_operand.hbm [shape: f32[2,8,128], index: 0, kind: input, shape index: {}]
  %s1 = inlined_call_operand.hbm [shape: f32[2,128,128], index: 1, kind: input, shape index: {}]
  %s2 = inlined_call_operand.hbm [shape: f32[2,1,128], index: 2, kind: input, shape index: {}]
  %s3 = inlined_call_operand.hbm [shape: f32[128,128], index: 3, kind: input, shape index: {}]
  %s4 = inlined_call_operand.vmem [shape: f32[1,128], index: 4, kind: input, shape index: {}]
  %s5 = inlined_call_operand.hbm [shape: f32[128,128], index: 5, kind: input, shape index: {}]
  %s6 = inlined_call_operand.vmem [shape: f32[1,128], index: 6, kind: input, shape index: {}]
  %s7 = inlined_call_operand.hbm [shape: f32[2,8,128], index: 7, kind: output, shape index: {}]
  %s8 = sld [smem:[#allocation0]]
  $region58: #{tpu_custom_call.1} parent=0
    _
  %s10 = ssub.s32 1, %s8
  %s11 = scalar_select 0, %s10, %s8
  $region1: #{tpu_custom_call.1} parent=0
    #allocation2 [shape = 'u8[8192]{0}', space=vmem, size = 0x2000, scoped, tag = 'input window, operand 0, single buffered']
    #allocation3 [shape = 's32[1]{0}', space=sflag, size = 0x4, scoped, tag = 'scoped memory for tpu_custom_call.1']
    #allocation4 [shape = 's32[1]{0}', space=sflag, size = 0x4, scoped, tag = 'scoped memory for tpu_custom_call.1']
    #allocation5 [shape = 'u8[131072]{0}', space=vmem, size = 0x20000, scoped, tag = 'input window, operand 1, single buffered']
    #allocation6 [shape = 's32[1]{0}', space=sflag, size = 0x4, scoped, tag = 'scoped memory for tpu_custom_call.1']
    #allocation7 [shape = 'u8[1024]{0}', space=vmem, size = 0x400, scoped, tag = 'input window, operand 2, single buffered']
    #allocation8 [shape = 'u8[65536]{0}', space=vmem, size = 0x10000, scoped, tag = 'input window, operand 3, single buffered']
    #allocation9 [shape = 's32[1]{0}', space=sflag, size = 0x4, scoped, tag = 'scoped memory for tpu_custom_call.1']
    #allocation10 [shape = 'u8[65536]{0}', space=vmem, size = 0x10000, scoped, tag = 'input window, operand 5, single buffered']
    #allocation11 [shape = 'u8[8192]{0}', space=vmem, size = 0x2000, scoped, tag = 'output window, operand 0, single buffered']
    %12 = vsyncpa [#allocation3], 0
    %13 = vsyncpa [#allocation6], 0
    %14 = vsyncpa [#allocation9], 0
    %15 = vsyncpa [#allocation4], 0
    // Predicated region
    $region2: #{tpu_custom_call.1} parent=1 // pred_check
      _
    $region3: #{tpu_custom_call.1} parent=1 // pred_check_branch
      %17 = sbr.rel (0) target = $region5
    $region4: #{tpu_custom_call.1} parent=1 // pred_region
      %19 = vsyncadd [#allocation3], 0
      %s20 = sshll.u32 %s0, 4
      %s21 = int_to_ptr.hbm [resolvable:$true] %s20
      %s22 = sshll.u32 [#allocation2], 4
      %s23 = int_to_ptr.vmem [resolvable:$true] %s22
      %28 = dma.hbm_to_vmem [thread:$0]  %s21, 256, %s23, [#allocation3], 128, 128, 8
    $region5: #{tpu_custom_call.1} parent=1 // pred_fallthru
      _
    // Predicated region
    $region6: #{tpu_custom_call.1} parent=1 // pred_check
      _
    $region7: #{tpu_custom_call.1} parent=1 // pred_check_branch
      %30 = sbr.rel (0) target = $region9
    $region8: #{tpu_custom_call.1} parent=1 // pred_region
      %32 = vsyncadd [#allocation6], 0
      %s33 = sshll.u32 %s1, 4
      %s34 = int_to_ptr.hbm [resolvable:$true] %s33
      %s35 = sshll.u32 [#allocation5], 4
      %s36 = int_to_ptr.vmem [resolvable:$true] %s35
      %41 = dma.hbm_to_vmem [thread:$0]  %s34, 4096, %s36, [#allocation6], 128, 128, 8
    $region9: #{tpu_custom_call.1} parent=1 // pred_fallthru
      _
    // Predicated region
    $region10: #{tpu_custom_call.1} parent=1 // pred_check
      _
    $region11: #{tpu_custom_call.1} parent=1 // pred_check_branch
      %43 = sbr.rel (0) target = $region13
    $region12: #{tpu_custom_call.1} parent=1 // pred_region
      %45 = vsyncadd [#allocation6], 0
      %s46 = sshll.u32 %s2, 4
      %s47 = int_to_ptr.hbm [resolvable:$true] %s46
      %s48 = sshll.u32 [#allocation7], 4
      %s49 = int_to_ptr.vmem [resolvable:$true] %s48
      %54 = dma.hbm_to_vmem [thread:$0]  %s47, 32, %s49, [#allocation6], 16, 16, 1
    $region13: #{tpu_custom_call.1} parent=1 // pred_fallthru
      _
    // Predicated region
    $region14: #{tpu_custom_call.1} parent=1 // pred_check
      _
    $region15: #{tpu_custom_call.1} parent=1 // pred_check_branch
      %56 = sbr.rel (0) target = $region17
    $region16: #{tpu_custom_call.1} parent=1 // pred_region
      %58 = vsyncadd [#allocation9], 0
      %s59 = sshll.u32 %s3, 4
      %s60 = int_to_ptr.hbm [resolvable:$true] %s59
      %s61 = sshll.u32 [#allocation8], 4
      %s62 = int_to_ptr.vmem [resolvable:$true] %s61
      %67 = dma.hbm_to_vmem [thread:$0]  %s60, 2048, %s62, [#allocation9], 128, 128, 8
    $region17: #{tpu_custom_call.1} parent=1 // pred_fallthru
      _
    // Predicated region
    $region18: #{tpu_custom_call.1} parent=1 // pred_check
      _
    $region19: #{tpu_custom_call.1} parent=1 // pred_check_branch
      %69 = sbr.rel (0) target = $region21
    $region20: #{tpu_custom_call.1} parent=1 // pred_region
      _
    $region21: #{tpu_custom_call.1} parent=1 // pred_fallthru
      _
    // Predicated region
    $region22: #{tpu_custom_call.1} parent=1 // pred_check
      _
    $region23: #{tpu_custom_call.1} parent=1 // pred_check_branch
      %71 = sbr.rel (0) target = $region25
    $region24: #{tpu_custom_call.1} parent=1 // pred_region
      %73 = vsyncadd [#allocation9], 0
      %s74 = sshll.u32 %s5, 4
      %s75 = int_to_ptr.hbm [resolvable:$true] %s74
      %s76 = sshll.u32 [#allocation10], 4
      %s77 = int_to_ptr.vmem [resolvable:$true] %s76
      %82 = dma.hbm_to_vmem [thread:$0]  %s75, 2048, %s77, [#allocation9], 128, 128, 8
    $region25: #{tpu_custom_call.1} parent=1 // pred_fallthru
      _
    // Predicated region
    $region26: #{tpu_custom_call.1} parent=1 // pred_check
      _
    $region27: #{tpu_custom_call.1} parent=1 // pred_check_branch
      %84 = sbr.rel (0) target = $region29
    $region28: #{tpu_custom_call.1} parent=1 // pred_region
      _
    $region29: #{tpu_custom_call.1} parent=1 // pred_fallthru
      _
    // Predicated region
    $region30: #{tpu_custom_call.1} parent=1 // pred_check
      _
    $region31: #{tpu_custom_call.1} parent=1 // pred_check_branch
      %86 = sbr.rel (0) target = $region33
    $region32: #{tpu_custom_call.1} parent=1 // pred_region
      %88 = dma.done [#allocation3], 256
    $region33: #{tpu_custom_call.1} parent=1 // pred_fallthru
      _
    // Predicated region
    $region34: #{tpu_custom_call.1} parent=1 // pred_check
      _
    $region35: #{tpu_custom_call.1} parent=1 // pred_check_branch
      %90 = sbr.rel (0) target = $region37
    $region36: #{tpu_custom_call.1} parent=1 // pred_region
      %92 = dma.done [#allocation6], 4096
    $region37: #{tpu_custom_call.1} parent=1 // pred_fallthru
      _
    // Predicated region
    $region38: #{tpu_custom_call.1} parent=1 // pred_check
      _
    $region39: #{tpu_custom_call.1} parent=1 // pred_check_branch
      %94 = sbr.rel (0) target = $region41
    $region40: #{tpu_custom_call.1} parent=1 // pred_region
      %96 = dma.done [#allocation6], 32
    $region41: #{tpu_custom_call.1} parent=1 // pred_fallthru
      _
    // Predicated region
    $region42: #{tpu_custom_call.1} parent=1 // pred_check
      _
    $region43: #{tpu_custom_call.1} parent=1 // pred_check_branch
      %98 = sbr.rel (0) target = $region45
    $region44: #{tpu_custom_call.1} parent=1 // pred_region
      %100 = dma.done [#allocation9], 2048
    $region45: #{tpu_custom_call.1} parent=1 // pred_fallthru
      _
    // Predicated region
    $region46: #{tpu_custom_call.1} parent=1 // pred_check
      _
    $region47: #{tpu_custom_call.1} parent=1 // pred_check_branch
      %102 = sbr.rel (0) target = $region49
    $region48: #{tpu_custom_call.1} parent=1 // pred_region
      %104 = dma.done [#allocation9], 2048
    $region49: #{tpu_custom_call.1} parent=1 // pred_fallthru
      _
    %v105 = vld [vmem:[#allocation2] sm:$0xff]
    %v106 = vld [vmem:[#allocation2 + $0x8] sm:$0xff]
    %v107 = vld [vmem:[#allocation5] sm:$0xff]
    %v108 = vld [vmem:[#allocation5 + $0x8] sm:$0xff]
    %v109 = vld [vmem:[#allocation5 + $0x10] sm:$0xff]
    %v110 = vld [vmem:[#allocation5 + $0x18] sm:$0xff]
    %v111 = vld [vmem:[#allocation5 + $0x20] sm:$0xff]
    %v112 = vld [vmem:[#allocation5 + $0x28] sm:$0xff]
    %v113 = vld [vmem:[#allocation5 + $0x30] sm:$0xff]
    %v114 = vld [vmem:[#allocation5 + $0x38] sm:$0xff]
    %v115 = vld [vmem:[#allocation5 + $0x40] sm:$0xff]
    %v116 = vld [vmem:[#allocation5 + $0x48] sm:$0xff]
    %v117 = vld [vmem:[#allocation5 + $0x50] sm:$0xff]
    %v118 = vld [vmem:[#allocation5 + $0x58] sm:$0xff]
    %v119 = vld [vmem:[#allocation5 + $0x60] sm:$0xff]
    %v120 = vld [vmem:[#allocation5 + $0x68] sm:$0xff]
    %v121 = vld [vmem:[#allocation5 + $0x70] sm:$0xff]
    %v122 = vld [vmem:[#allocation5 + $0x78] sm:$0xff]
    %v123 = vld [vmem:[#allocation5 + $0x80] sm:$0xff]
    %v124 = vld [vmem:[#allocation5 + $0x88] sm:$0xff]
    %v125 = vld [vmem:[#allocation5 + $0x90] sm:$0xff]
    %v126 = vld [vmem:[#allocation5 + $0x98] sm:$0xff]
    %v127 = vld [vmem:[#allocation5 + $0xa0] sm:$0xff]
    %v128 = vld [vmem:[#allocation5 + $0xa8] sm:$0xff]
    %v129 = vld [vmem:[#allocation5 + $0xb0] sm:$0xff]
    %v130 = vld [vmem:[#allocation5 + $0xb8] sm:$0xff]
    %v131 = vld [vmem:[#allocation5 + $0xc0] sm:$0xff]
    %v132 = vld [vmem:[#allocation5 + $0xc8] sm:$0xff]
    %v133 = vld [vmem:[#allocation5 + $0xd0] sm:$0xff]
    %v134 = vld [vmem:[#allocation5 + $0xd8] sm:$0xff]
    %v135 = vld [vmem:[#allocation5 + $0xe0] sm:$0xff]
    %v136 = vld [vmem:[#allocation5 + $0xe8] sm:$0xff]
    %v137 = vld [vmem:[#allocation5 + $0xf0] sm:$0xff]
    %v138 = vld [vmem:[#allocation5 + $0xf8] sm:$0xff]
    %v139 = vld [vmem:[#allocation8] sm:$0xff]
    %v140 = vld [vmem:[#allocation8 + $0x8] sm:$0xff]
    %v141 = vld [vmem:[#allocation8 + $0x10] sm:$0xff]
    %v142 = vld [vmem:[#allocation8 + $0x18] sm:$0xff]
    %v143 = vld [vmem:[#allocation8 + $0x20] sm:$0xff]
    %v144 = vld [vmem:[#allocation8 + $0x28] sm:$0xff]
    %v145 = vld [vmem:[#allocation8 + $0x30] sm:$0xff]
    %v146 = vld [vmem:[#allocation8 + $0x38] sm:$0xff]
    %v147 = vld [vmem:[#allocation8 + $0x40] sm:$0xff]
    %v148 = vld [vmem:[#allocation8 + $0x48] sm:$0xff]
    %v149 = vld [vmem:[#allocation8 + $0x50] sm:$0xff]
    %v150 = vld [vmem:[#allocation8 + $0x58] sm:$0xff]
    %v151 = vld [vmem:[#allocation8 + $0x60] sm:$0xff]
    %v152 = vld [vmem:[#allocation8 + $0x68] sm:$0xff]
    %v153 = vld [vmem:[#allocation8 + $0x70] sm:$0xff]
    %v154 = vld [vmem:[#allocation8 + $0x78] sm:$0xff]
    %v155 = vld [vmem:[%s4] sm:$0x1]
    %v157 = vperm.slane %v155, 0
    %159 = vmatpush.msra.mxu0 %v154
    %160 = vmatpush.msra.mxu0 %v153
    %161 = vmatpush.msra.mxu0 %v152
    %162 = vmatpush.msra.mxu0 %v151
    %163 = vmatpush.msra.mxu0 %v150
    %164 = vmatpush.msra.mxu0 %v149
    %165 = vmatpush.msra.mxu0 %v148
    %166 = vmatpush.msra.mxu0 %v147
    %167 = vmatpush.msra.mxu0 %v146
    %168 = vmatpush.msra.mxu0 %v145
    %169 = vmatpush.msra.mxu0 %v144
    %170 = vmatpush.msra.mxu0 %v143
    %171 = vmatpush.msra.mxu0 %v142
    %172 = vmatpush.msra.mxu0 %v141
    %173 = vmatpush.msra.mxu0 %v140
    %174 = vmatpush.msra.mxu0 %v139
    %175 = vmatmul.f32.gmra.mxu0 %v105
    %v176 = vpop.f32.mrf.mxu0
    %v177 = vadd.f32 %v157, %v176
    %178 = vmatmul.f32.gmra.mxu0 %v106
    %v179 = vpop.f32.mrf.mxu0
    %v180 = vadd.f32 %v157, %v179
    %181 = vdwg.mxu0
    %v182 = vld [vmem:[#allocation10] sm:$0xff]
    %v183 = vld [vmem:[#allocation10 + $0x8] sm:$0xff]
    %v184 = vld [vmem:[#allocation10 + $0x10] sm:$0xff]
    %v185 = vld [vmem:[#allocation10 + $0x18] sm:$0xff]
    %v186 = vld [vmem:[#allocation10 + $0x20] sm:$0xff]
    %v187 = vld [vmem:[#allocation10 + $0x28] sm:$0xff]
    %v188 = vld [vmem:[#allocation10 + $0x30] sm:$0xff]
    %v189 = vld [vmem:[#allocation10 + $0x38] sm:$0xff]
    %v190 = vld [vmem:[#allocation10 + $0x40] sm:$0xff]
    %v191 = vld [vmem:[#allocation10 + $0x48] sm:$0xff]
    %v192 = vld [vmem:[#allocation10 + $0x50] sm:$0xff]
    %v193 = vld [vmem:[#allocation10 + $0x58] sm:$0xff]
    %v194 = vld [vmem:[#allocation10 + $0x60] sm:$0xff]
    %v195 = vld [vmem:[#allocation10 + $0x68] sm:$0xff]
    %v196 = vld [vmem:[#allocation10 + $0x70] sm:$0xff]
    %v197 = vld [vmem:[#allocation10 + $0x78] sm:$0xff]
    %v198 = vld [vmem:[%s6] sm:$0x1]
    %v200 = vperm.slane %v198, 0
    %202 = vmatpush.msra.mxu0 %v197
    %203 = vmatpush.msra.mxu0 %v196
    %204 = vmatpush.msra.mxu0 %v195
    %205 = vmatpush.msra.mxu0 %v194
    %206 = vmatpush.msra.mxu0 %v193
    %207 = vmatpush.msra.mxu0 %v192
    %208 = vmatpush.msra.mxu0 %v191
    %209 = vmatpush.msra.mxu0 %v190
    %210 = vmatpush.msra.mxu0 %v189
    %211 = vmatpush.msra.mxu0 %v188
    %212 = vmatpush.msra.mxu0 %v187
    %213 = vmatpush.msra.mxu0 %v186
    %214 = vmatpush.msra.mxu0 %v185
    %215 = vmatpush.msra.mxu0 %v184
    %216 = vmatpush.msra.mxu0 %v183
    %217 = vmatpush.msra.mxu0 %v182
    %218 = vmatmul.f32.gmra.mxu0 %v107
    %v219 = vpop.f32.mrf.mxu0
    %v220 = vadd.f32 %v200, %v219
    %221 = vmatmul.f32.gmra.mxu0 %v108
    %v222 = vpop.f32.mrf.mxu0
    %v223 = vadd.f32 %v200, %v222
    %224 = vmatmul.f32.gmra.mxu0 %v109
    %v225 = vpop.f32.mrf.mxu0
    %v226 = vadd.f32 %v200, %v225
    %227 = vmatmul.f32.gmra.mxu0 %v110
    %v228 = vpop.f32.mrf.mxu0
    %v229 = vadd.f32 %v200, %v228
    %230 = vmatmul.f32.gmra.mxu0 %v111
    %v231 = vpop.f32.mrf.mxu0
    %v232 = vadd.f32 %v200, %v231
    %233 = vmatmul.f32.gmra.mxu0 %v112
    %v234 = vpop.f32.mrf.mxu0
    %v235 = vadd.f32 %v200, %v234
    %236 = vmatmul.f32.gmra.mxu0 %v113
    %v237 = vpop.f32.mrf.mxu0
    %v238 = vadd.f32 %v200, %v237
    %239 = vmatmul.f32.gmra.mxu0 %v114
    %v240 = vpop.f32.mrf.mxu0
    %v241 = vadd.f32 %v200, %v240
    %242 = vmatmul.f32.gmra.mxu0 %v115
    %v243 = vpop.f32.mrf.mxu0
    %v244 = vadd.f32 %v200, %v243
    %245 = vmatmul.f32.gmra.mxu0 %v116
    %v246 = vpop.f32.mrf.mxu0
    %v247 = vadd.f32 %v200, %v246
    %248 = vmatmul.f32.gmra.mxu0 %v117
    %v249 = vpop.f32.mrf.mxu0
    %v250 = vadd.f32 %v200, %v249
    %251 = vmatmul.f32.gmra.mxu0 %v118
    %v252 = vpop.f32.mrf.mxu0
    %v253 = vadd.f32 %v200, %v252
    %254 = vmatmul.f32.gmra.mxu0 %v119
    %v255 = vpop.f32.mrf.mxu0
    %v256 = vadd.f32 %v200, %v255
    %257 = vmatmul.f32.gmra.mxu0 %v120
    %v258 = vpop.f32.mrf.mxu0
    %v259 = vadd.f32 %v200, %v258
    %260 = vmatmul.f32.gmra.mxu0 %v121
    %v261 = vpop.f32.mrf.mxu0
    %v262 = vadd.f32 %v200, %v261
    %263 = vmatmul.f32.gmra.mxu0 %v122
    %v264 = vpop.f32.mrf.mxu0
    %v265 = vadd.f32 %v200, %v264
    %266 = vmatmul.f32.gmra.mxu0 %v123
    %v267 = vpop.f32.mrf.mxu0
    %v268 = vadd.f32 %v200, %v267
    %269 = vmatmul.f32.gmra.mxu0 %v124
    %v270 = vpop.f32.mrf.mxu0
    %v271 = vadd.f32 %v200, %v270
    %272 = vmatmul.f32.gmra.mxu0 %v125
    %v273 = vpop.f32.mrf.mxu0
    %v274 = vadd.f32 %v200, %v273
    %275 = vmatmul.f32.gmra.mxu0 %v126
    %v276 = vpop.f32.mrf.mxu0
    %v277 = vadd.f32 %v200, %v276
    %278 = vmatmul.f32.gmra.mxu0 %v127
    %v279 = vpop.f32.mrf.mxu0
    %v280 = vadd.f32 %v200, %v279
    %281 = vmatmul.f32.gmra.mxu0 %v128
    %v282 = vpop.f32.mrf.mxu0
    %v283 = vadd.f32 %v200, %v282
    %284 = vmatmul.f32.gmra.mxu0 %v129
    %v285 = vpop.f32.mrf.mxu0
    %v286 = vadd.f32 %v200, %v285
    %287 = vmatmul.f32.gmra.mxu0 %v130
    %v288 = vpop.f32.mrf.mxu0
    %v289 = vadd.f32 %v200, %v288
    %290 = vmatmul.f32.gmra.mxu0 %v131
    %v291 = vpop.f32.mrf.mxu0
    %v292 = vadd.f32 %v200, %v291
    %293 = vmatmul.f32.gmra.mxu0 %v132
    %v294 = vpop.f32.mrf.mxu0
    %v295 = vadd.f32 %v200, %v294
    %296 = vmatmul.f32.gmra.mxu0 %v133
    %v297 = vpop.f32.mrf.mxu0
    %v298 = vadd.f32 %v200, %v297
    %299 = vmatmul.f32.gmra.mxu0 %v134
    %v300 = vpop.f32.mrf.mxu0
    %v301 = vadd.f32 %v200, %v300
    %302 = vmatmul.f32.gmra.mxu0 %v135
    %v303 = vpop.f32.mrf.mxu0
    %v304 = vadd.f32 %v200, %v303
    %305 = vmatmul.f32.gmra.mxu0 %v136
    %v306 = vpop.f32.mrf.mxu0
    %v307 = vadd.f32 %v200, %v306
    %308 = vmatmul.f32.gmra.mxu0 %v137
    %v309 = vpop.f32.mrf.mxu0
    %v310 = vadd.f32 %v200, %v309
    %311 = vmatmul.f32.gmra.mxu0 %v138
    %v312 = vpop.f32.mrf.mxu0
    %v313 = vadd.f32 %v200, %v312
    %314 = vdwg.mxu0
    %v315 = vld [vmem:[#allocation7] sm:$0x1]
    %v316 = vld [vmem:[#allocation7 + $0x1] sm:$0x1]
    %v317 = vsub.f32 1.0, %v315
    %v318 = vsub.f32 1.0, %v316
    %v319 = vmul.f32 %v317, -10000.0
    %v320 = vmul.f32 %v318, -10000.0
    %v323 = vperm.slane %v319, 0
    %v324 = vperm.slane %v320, 0
    %327 = vmatpush.xpose.msra.mxu0 %v265
    %328 = vmatpush.xpose.msra.mxu0 %v262
    %329 = vmatpush.xpose.msra.mxu0 %v259
    %330 = vmatpush.xpose.msra.mxu0 %v256
    %331 = vmatpush.xpose.msra.mxu0 %v253
    %332 = vmatpush.xpose.msra.mxu0 %v250
    %333 = vmatpush.xpose.msra.mxu0 %v247
    %334 = vmatpush.xpose.msra.mxu0 %v244
    %335 = vmatpush.xpose.msra.mxu0 %v241
    %336 = vmatpush.xpose.msra.mxu0 %v238
    %337 = vmatpush.xpose.msra.mxu0 %v235
    %338 = vmatpush.xpose.msra.mxu0 %v232
    %339 = vmatpush.xpose.msra.mxu0 %v229
    %340 = vmatpush.xpose.msra.mxu0 %v226
    %341 = vmatpush.xpose.msra.mxu0 %v223
    %342 = vmatpush.xpose.msra.mxu0 %v220
    %343 = vmatmul.f32.gmra.mxu0 %v177
    %v344 = vpop.f32.mrf.mxu0
    %v345 = vadd.f32 %v323, %v344
    %346 = vdwg.mxu0
    %347 = vmatpush.xpose.msra.mxu0 %v313
    %348 = vmatpush.xpose.msra.mxu0 %v310
    %349 = vmatpush.xpose.msra.mxu0 %v307
    %350 = vmatpush.xpose.msra.mxu0 %v304
    %351 = vmatpush.xpose.msra.mxu0 %v301
    %352 = vmatpush.xpose.msra.mxu0 %v298
    %353 = vmatpush.xpose.msra.mxu0 %v295
    %354 = vmatpush.xpose.msra.mxu0 %v292
    %355 = vmatpush.xpose.msra.mxu0 %v289
    %356 = vmatpush.xpose.msra.mxu0 %v286
    %357 = vmatpush.xpose.msra.mxu0 %v283
    %358 = vmatpush.xpose.msra.mxu0 %v280
    %359 = vmatpush.xpose.msra.mxu0 %v277
    %360 = vmatpush.xpose.msra.mxu0 %v274
    %361 = vmatpush.xpose.msra.mxu0 %v271
    %362 = vmatpush.xpose.msra.mxu0 %v268
    %363 = vmatmul.f32.gmra.mxu0 %v180
    %v364 = vpop.f32.mrf.mxu0
    %v365 = vadd.f32 %v324, %v364
    %366 = vdwg.mxu0
    %367 = vst [vmem:[#allocation11] sm:$0xff] %v345
    %368 = vst [vmem:[#allocation11 + $0x8] sm:$0xff] %v365
    // Predicated region
    $region50: #{tpu_custom_call.1} parent=1 // pred_check
      _
    $region51: #{tpu_custom_call.1} parent=1 // pred_check_branch
      %370 = sbr.rel (0) target = $region53
    $region52: #{tpu_custom_call.1} parent=1 // pred_region
      %372 = vsyncadd [#allocation4], 0
      %s373 = sshll.u32 [#allocation11], 4
      %s374 = int_to_ptr.vmem [resolvable:$true] %s373
      %s375 = sshll.u32 %s7, 4
      %s376 = int_to_ptr.hbm [resolvable:$true] %s375
      %381 = dma.vmem_to_hbm [thread:$0]  %s374, 256, %s376, [#allocation4], 128, 128, 8
    $region53: #{tpu_custom_call.1} parent=1 // pred_fallthru
      _
    // Predicated region
    $region54: #{tpu_custom_call.1} parent=1 // pred_check
      _
    $region55: #{tpu_custom_call.1} parent=1 // pred_check_branch
      %383 = sbr.rel (0) target = $region57
    $region56: #{tpu_custom_call.1} parent=1 // pred_region
      %385 = dma.done [#allocation4], 256
    $region57: #{tpu_custom_call.1} parent=1 // pred_fallthru
      _
    %386 = vsyncpa [#allocation3], 1
    %387 = vsyncpa [#allocation6], 1
    %388 = vsyncpa [#allocation9], 1
    %389 = vsyncpa [#allocation4], 1

</llo_original>
